<compile_context>
chip_gen: v7x
topology: tpu7x:2x2x1
jax: 0.10.0
libtpu: 0.0.40
codegen_flags: <defaults>
</compile_context>

<pallas_src>
import functools
import math

import jax
import jax.numpy as jnp
from jax import lax
from jax.experimental import pallas as pl
from jax.experimental.pallas import tpu as pltpu

LANE = 128


def _round_up(x, m):
    return -(-x // m) * m


def _sublane_multiple(dtype):
    # f32 -> 8, bf16 -> 16, int8/fp8 -> 32 (sub-32-bit dtypes pack sublanes).
    return 8 * max(1, 4 // jnp.dtype(dtype).itemsize)


def _device_kind():
    try:
        return jax.devices()[0].device_kind.lower()
    except Exception:
        return ""


def dice_partial_kernel(p_ref, t_ref, acc_i_ref, acc_pt_ref, *,
                        rows_per_block, total_rows, n_blocks, from_logits):
    s = pl.program_id(1)                       # reduction step within a core
    gb = pl.program_id(0) * pl.num_programs(1) + s   # global block index

    @pl.when(s == 0)
    def _():
        acc_i_ref[...] = jnp.zeros_like(acc_i_ref)
        acc_pt_ref[...] = jnp.zeros_like(acc_pt_ref)

    # Cast (and optional sigmoid) after the HBM->VMEM DMA; VPU/EUP slack is
    # large in this mem-bound loop.
    p = p_ref[...].astype(jnp.float32)         # (B, rows_per_block, rcols)
    t = t_ref[...].astype(jnp.float32)
    if from_logits:
        p = jax.nn.sigmoid(p)

    def accumulate(pv, tv):
        # Merged accumulators: intersection and (preds + targets) sums,
        # reduced only over the row axis; lane reduction happens outside.
        acc_i_ref[...] += jnp.sum(pv * tv, axis=1)     # (B, rcols)
        acc_pt_ref[...] += jnp.sum(pv + tv, axis=1)    # (B, rcols)

    if n_blocks * rows_per_block != total_rows:
        # Only the final block is ragged: gate the mask so full blocks run
        # the bare accumulate path (keeps the kernel HBM-bound).
        @pl.when(gb == n_blocks - 1)
        def _():
            rows = lax.broadcasted_iota(jnp.int32, p.shape, 1)
            valid = (gb * rows_per_block + rows) < total_rows
            # Keep the select-based mask: OOB tail data may be Inf/NaN.
            accumulate(jnp.where(valid, p, 0.0), jnp.where(valid, t, 0.0))

        @pl.when(gb != n_blocks - 1)
        def _():
            accumulate(p, t)
    else:
        accumulate(p, t)


def dice_loss(preds, targets, eps=1e-6, *, from_logits=False,
              block_bytes=None, num_cores=None):
    """Pallas implementation of DiceLoss.forward (returns a scalar)."""
    assert preds.shape == targets.shape, (preds.shape, targets.shape)
    B = preds.shape[0]
    n = 1
    for d in preds.shape[1:]:
        n *= d

    # Lane-exact (B, rows, rcols) view with no pad/copy pass:
    #   * n % 128 == 0  -> (B, n/128, 128): full lane occupancy.
    #   * otherwise     -> (B, C*H, W): last dim equals the full array dim,
    #     so the (8,128) rule is satisfied and HBM reads only real data.
    if n % LANE == 0:
        rcols, total_rows = LANE, n // LANE
    else:
        rcols = preds.shape[-1]
        total_rows = n // rcols
    p3 = preds.reshape(B, total_rows, rcols)
    t3 = targets.reshape(B, total_rows, rcols)

    # Generation-aware defaults.
    kind = _device_kind()
    if num_cores is None:
        num_cores = 2 if "v7" in kind else 1          # single TC on v5e/v6e
    if block_bytes is None:
        if "v7" in kind:
            block_bytes = 6 * 1024 * 1024
        elif "v5 lite" in kind or "v5e" in kind:
            block_bytes = 2 * 1024 * 1024
        else:                                          # v6e and others
            block_bytes = 4 * 1024 * 1024

    # Block sizing from a per-input VMEM budget, rounded to the dtype's
    # sublane packing (8 f32 / 16 bf16 / 32 int8).
    sub = max(_sublane_multiple(p3.dtype), _sublane_multiple(t3.dtype))
    lanes = _round_up(rcols, LANE)
    itemsize = max(p3.dtype.itemsize, t3.dtype.itemsize)
    per_row_bytes = B * lanes * itemsize
    rows_budget = max(sub, (block_bytes // per_row_bytes) // sub * sub)
    rows_per_block = min(_round_up(total_rows, sub), rows_budget)
    n_blocks = pl.cdiv(total_rows, rows_per_block)

    # No clamped / redundant trailing blocks: the grid covers exactly
    # n_blocks; if the core count does not divide it, fall back.
    num_cores = max(1, min(int(num_cores), n_blocks))
    if n_blocks % num_cores != 0:
        num_cores = math.gcd(num_cores, n_blocks) or 1
    steps_per_core = n_blocks // num_cores

    def in_index(c, s):
        return (0, c * steps_per_core + s, 0)

    def out_index(c, s):
        return (c, 0, 0)

    kernel = functools.partial(
        dice_partial_kernel,
        rows_per_block=rows_per_block,
        total_rows=total_rows,
        n_blocks=n_blocks,
        from_logits=bool(from_logits),
    )

    # Explicit scoped-VMEM limit sized to the double-buffered working set
    # (capped well inside every generation's physical VMEM).
    in_block_bytes = (B * rows_per_block * lanes
                      * (p3.dtype.itemsize + t3.dtype.itemsize))
    vmem_limit = int(min(max(2 * in_block_bytes + (6 << 20), 16 << 20),
                         32 << 20))

    bytes_accessed = int(
        B * total_rows * rcols * (p3.dtype.itemsize + t3.dtype.itemsize)
        + 2 * num_cores * B * lanes * 4)

    part_i, part_pt = pl.pallas_call(
        kernel,
        out_shape=(
            jax.ShapeDtypeStruct((num_cores, B, rcols), jnp.float32),
            jax.ShapeDtypeStruct((num_cores, B, rcols), jnp.float32),
        ),
        grid_spec=pltpu.PrefetchScalarGridSpec(
            num_scalar_prefetch=0,
            grid=(num_cores, steps_per_core),
            in_specs=[
                pl.BlockSpec((B, rows_per_block, rcols), in_index),
                pl.BlockSpec((B, rows_per_block, rcols), in_index),
            ],
            out_specs=[
                pl.BlockSpec((None, B, rcols), out_index),
                pl.BlockSpec((None, B, rcols), out_index),
            ],
        ),
        compiler_params=pltpu.CompilerParams(
            dimension_semantics=("parallel", "arbitrary"),
            vmem_limit_bytes=vmem_limit,
        ),
        cost_estimate=pl.CostEstimate(
            flops=int(3 * B * total_rows * rcols),
            transcendentals=int(B * total_rows * rcols) if from_logits else 0,
            bytes_accessed=bytes_accessed,
        ),
    )(p3, t3)

    # Tiny final combine in plain JAX (merges per-core partials + lanes).
    inter = jnp.sum(part_i, axis=(0, 2))     # (B,)
    denom = jnp.sum(part_pt, axis=(0, 2))    # (B,)
    dice = (2.0 * inter + eps) / (denom + eps)
    return 1.0 - jnp.mean(dice)


def dice_loss_ref(preds, targets, eps=1e-6):
    """Pure-JAX reference matching the PyTorch DiceLoss forward exactly."""
    B = preds.shape[0]
    p = preds.reshape(B, -1).astype(jnp.float32)
    t = targets.reshape(B, -1).astype(jnp.float32)
    inter = jnp.sum(p * t, axis=1)
    dice = (2.0 * inter + eps) / (jnp.sum(p, axis=1) + jnp.sum(t, axis=1) + eps)
    return 1.0 - jnp.mean(dice)


if __name__ == "__main__":
    key = jax.random.PRNGKey(0)
    kp, kt = jax.random.split(key)

    # Loss inputs consistent with the UNet training script: sigmoid output of
    # shape (B, out_channels=1, H, W) against a binary mask of the same shape.
    B, C, H, W = 2, 1, 128, 128
    logits = jax.random.normal(kp, (B, C, H, W), jnp.float32)
    preds = jax.nn.sigmoid(logits)
    targets = (jax.random.uniform(kt, (B, C, H, W)) > 0.5).astype(jnp.float32)
    ref = dice_loss_ref(preds, targets)

    # 1) Default config: generation-aware block size / core count.
    loss = jax.block_until_ready(dice_loss(preds, targets))
    assert jnp.allclose(loss, ref, atol=1e-5, rtol=1e-5), (loss, ref)

    # 2) bf16 inputs, forced small blocks: multi-step reduction grid with
    #    16-row sublane-aligned blocks, no mask on full blocks.
    p_bf, t_bf = preds.astype(jnp.bfloat16), targets.astype(jnp.bfloat16)
    ref_bf = dice_loss_ref(p_bf, t_bf)
    loss2 = jax.block_until_ready(dice_loss(p_bf, t_bf, block_bytes=8 * 1024))
    assert jnp.allclose(loss2, ref_bf, atol=1e-4, rtol=1e-4), (loss2, ref_bf)

    # 3) Ragged size (100x100): lane-exact (B, C*H, W) view (no pad copy),
    #    row mask gated to the final block only.
    p_r, t_r = preds[:, :, :100, :100], targets[:, :, :100, :100]
    ref_r = dice_loss_ref(p_r, t_r)
    loss3 = jax.block_until_ready(dice_loss(p_r, t_r, block_bytes=8 * 1024))
    assert jnp.allclose(loss3, ref_r, atol=1e-5, rtol=1e-5), (loss3, ref_r)

    # 4) Fused sigmoid: logits in, sigmoid computed inside the kernel (EUP).
    loss4 = jax.block_until_ready(dice_loss(logits, targets, from_logits=True))
    assert jnp.allclose(loss4, ref, atol=1e-4, rtol=1e-4), (loss4, ref)

    print("KERNEL_OK")
</pallas_src>

<mosaic_0001>
module attributes {stable_mosaic.version = 11 : i64} {
  func.func @dice_partial_kernel(%arg0: i32, %arg1: i32, %arg2: memref<2x128x128xf32, #tpu.memory_space<vmem>>, %arg3: memref<2x128x128xf32, #tpu.memory_space<vmem>>, %arg4: memref<1x2x128xf32, #tpu.memory_space<vmem>>, %arg5: memref<1x2x128xf32, #tpu.memory_space<vmem>>) attributes {dimension_semantics = [#tpu.dimension_semantics<parallel>, #tpu.dimension_semantics<arbitrary>], iteration_bounds = array<i64: 1, 1>, scalar_prefetch = 0 : i64, scratch_operands = 0 : i64, tpu.core_type = #tpu.core_type<tc>, window_params = [{transform_indices = @transform_0, window_bounds = array<i64: 2, 128, 128>}, {transform_indices = @transform_1, window_bounds = array<i64: 2, 128, 128>}, {transform_indices = @transform_2, window_bounds = array<i64: 1, 2, 128>}, {transform_indices = @transform_3, window_bounds = array<i64: 1, 2, 128>}]} {
    %c0_i32 = arith.constant 0 : i32
    %0 = arith.cmpi eq, %arg1, %c0_i32 : i32
    %1 = arith.extui %0 : i1 to i32
    %c0_i32_0 = arith.constant 0 : i32
    %2 = arith.cmpi ne, %1, %c0_i32_0 : i32
    scf.if %2 {
      %cst_19 = arith.constant 0.000000e+00 : f32
      %21 = vector.broadcast %cst_19 : f32 to vector<2x128xf32>
      %c0_20 = arith.constant 0 : index
      %c0_21 = arith.constant 0 : index
      %c0_22 = arith.constant 0 : index
      %22 = vector.load %arg4[%c0_20, %c0_21, %c0_22] : memref<1x2x128xf32, #tpu.memory_space<vmem>>, vector<1x2x128xf32>
      %23 = vector.shape_cast %22 : vector<1x2x128xf32> to vector<2x128xf32>
      %24 = vector.shape_cast %21 : vector<2x128xf32> to vector<1x2x128xf32>
      tpu.vector_store %arg4[%c0_20, %c0_21, %c0_22], %24 {strides = array<i32>} : memref<1x2x128xf32, #tpu.memory_space<vmem>>, vector<1x2x128xf32>,
      %cst_23 = arith.constant 0.000000e+00 : f32
      %25 = vector.broadcast %cst_23 : f32 to vector<2x128xf32>
      %c0_24 = arith.constant 0 : index
      %c0_25 = arith.constant 0 : index
      %c0_26 = arith.constant 0 : index
      %26 = vector.load %arg5[%c0_24, %c0_25, %c0_26] : memref<1x2x128xf32, #tpu.memory_space<vmem>>, vector<1x2x128xf32>
      %27 = vector.shape_cast %26 : vector<1x2x128xf32> to vector<2x128xf32>
      %28 = vector.shape_cast %25 : vector<2x128xf32> to vector<1x2x128xf32>
      tpu.vector_store %arg5[%c0_24, %c0_25, %c0_26], %28 {strides = array<i32>} : memref<1x2x128xf32, #tpu.memory_space<vmem>>, vector<1x2x128xf32>,
    } else {
    }
    %c0 = arith.constant 0 : index
    %c0_1 = arith.constant 0 : index
    %c0_2 = arith.constant 0 : index
    %3 = vector.load %arg2[%c0, %c0_1, %c0_2] : memref<2x128x128xf32, #tpu.memory_space<vmem>>, vector<2x128x128xf32>
    %c0_3 = arith.constant 0 : index
    %c0_4 = arith.constant 0 : index
    %c0_5 = arith.constant 0 : index
    %4 = vector.load %arg3[%c0_3, %c0_4, %c0_5] : memref<2x128x128xf32, #tpu.memory_space<vmem>>, vector<2x128x128xf32>
    %c0_6 = arith.constant 0 : index
    %c0_7 = arith.constant 0 : index
    %c0_8 = arith.constant 0 : index
    %5 = vector.load %arg4[%c0_6, %c0_7, %c0_8] : memref<1x2x128xf32, #tpu.memory_space<vmem>>, vector<1x2x128xf32>
    %6 = vector.shape_cast %5 : vector<1x2x128xf32> to vector<2x128xf32>
    %7 = arith.mulf %3, %4 : vector<2x128x128xf32>
    %cst = arith.constant dense<0.000000e+00> : vector<2x128xf32>
    %8 = vector.multi_reduction <add>, %7, %cst [1] : vector<2x128x128xf32> to vector<2x128xf32>
    %9 = arith.addf %6, %8 : vector<2x128xf32>
    %c0_9 = arith.constant 0 : index
    %c0_10 = arith.constant 0 : index
    %c0_11 = arith.constant 0 : index
    %10 = vector.load %arg4[%c0_9, %c0_10, %c0_11] : memref<1x2x128xf32, #tpu.memory_space<vmem>>, vector<1x2x128xf32>
    %11 = vector.shape_cast %10 : vector<1x2x128xf32> to vector<2x128xf32>
    %12 = vector.shape_cast %9 : vector<2x128xf32> to vector<1x2x128xf32>
    tpu.vector_store %arg4[%c0_9, %c0_10, %c0_11], %12 {strides = array<i32>} : memref<1x2x128xf32, #tpu.memory_space<vmem>>, vector<1x2x128xf32>,
    %c0_12 = arith.constant 0 : index
    %c0_13 = arith.constant 0 : index
    %c0_14 = arith.constant 0 : index
    %13 = vector.load %arg5[%c0_12, %c0_13, %c0_14] : memref<1x2x128xf32, #tpu.memory_space<vmem>>, vector<1x2x128xf32>
    %14 = vector.shape_cast %13 : vector<1x2x128xf32> to vector<2x128xf32>
    %15 = arith.addf %3, %4 : vector<2x128x128xf32>
    %cst_15 = arith.constant dense<0.000000e+00> : vector<2x128xf32>
    %16 = vector.multi_reduction <add>, %15, %cst_15 [1] : vector<2x128x128xf32> to vector<2x128xf32>
    %17 = arith.addf %14, %16 : vector<2x128xf32>
    %c0_16 = arith.constant 0 : index
    %c0_17 = arith.constant 0 : index
    %c0_18 = arith.constant 0 : index
    %18 = vector.load %arg5[%c0_16, %c0_17, %c0_18] : memref<1x2x128xf32, #tpu.memory_space<vmem>>, vector<1x2x128xf32>
    %19 = vector.shape_cast %18 : vector<1x2x128xf32> to vector<2x128xf32>
    %20 = vector.shape_cast %17 : vector<2x128xf32> to vector<1x2x128xf32>
    tpu.vector_store %arg5[%c0_16, %c0_17, %c0_18], %20 {strides = array<i32>} : memref<1x2x128xf32, #tpu.memory_space<vmem>>, vector<1x2x128xf32>,
    return
  }
  func.func @transform_0(%arg0: i32, %arg1: i32) -> (i32, i32, i32) {
    %c1_i32 = arith.constant 1 : i32
    %0 = arith.muli %arg0, %c1_i32 : i32
    %1 = arith.addi %0, %arg1 : i32
    %c0_i32 = arith.constant 0 : i32
    %c0_i32_0 = arith.constant 0 : i32
    %c0_i32_1 = arith.constant 0 : i32
    return %c0_i32, %1, %c0_i32_0 : i32, i32, i32
  }
  func.func @transform_1(%arg0: i32, %arg1: i32) -> (i32, i32, i32) {
    %c1_i32 = arith.constant 1 : i32
    %0 = arith.muli %arg0, %c1_i32 : i32
    %1 = arith.addi %0, %arg1 : i32
    %c0_i32 = arith.constant 0 : i32
    %c0_i32_0 = arith.constant 0 : i32
    %c0_i32_1 = arith.constant 0 : i32
    return %c0_i32, %1, %c0_i32_0 : i32, i32, i32
  }
  func.func @transform_2(%arg0: i32, %arg1: i32) -> (i32, i32, i32) {
    %c0_i32 = arith.constant 0 : i32
    %c0_i32_0 = arith.constant 0 : i32
    %c0_i32_1 = arith.constant 0 : i32
    return %arg0, %c0_i32, %c0_i32_0 : i32, i32, i32
  }
  func.func @transform_3(%arg0: i32, %arg1: i32) -> (i32, i32, i32) {
    %c0_i32 = arith.constant 0 : i32
    %c0_i32_0 = arith.constant 0 : i32
    %c0_i32_1 = arith.constant 0 : i32
    return %arg0, %c0_i32, %c0_i32_0 : i32, i32, i32
  }
}

</mosaic_0001>

<llo_original>
// kernel: tpu_custom_call.1
$region0: #{tpu_custom_call.1}
  #allocation0 [shape = 'u32[]', space=smem, size = 0x4, offset = 0x4, fixed_abs, tag = 'smem constant byte address 0x4 - core index']
  #allocation1 [shape = 'u32[144,128]{1,0:T(1,128)}', space=vmem, size = 0x12000, scoped, tag = 'internal scratch']
  %s0 = inlined_call_operand.hbm [shape: f32[2,128,128], index: 0, kind: input, shape index: {}]
  %s1 = inlined_call_operand.hbm [shape: f32[2,128,128], index: 1, kind: input, shape index: {}]
  %s2 = inlined_call_operand.hbm [shape: f32[1,2,128], index: 2, kind: output, shape index: {0}]
  %s3 = inlined_call_operand.hbm [shape: f32[1,2,128], index: 3, kind: output, shape index: {1}]
  %4 = xla_tuple %s2, %s3
  %s5 = sld [smem:[#allocation0]]
  $region38: #{tpu_custom_call.1} parent=0
    _
  %s7 = ssub.s32 1, %s5
  %s8 = scalar_select 0, %s7, %s5
  $region1: #{tpu_custom_call.1} parent=0
    #allocation2 [shape = 'u8[131072]{0}', space=vmem, size = 0x20000, scoped, tag = 'input window, operand 0, single buffered']
    #allocation3 [shape = 's32[1]{0}', space=sflag, size = 0x4, scoped, tag = 'scoped memory for tpu_custom_call.1']
    #allocation4 [shape = 's32[1]{0}', space=sflag, size = 0x4, scoped, tag = 'scoped memory for tpu_custom_call.1']
    #allocation5 [shape = 'u8[131072]{0}', space=vmem, size = 0x20000, scoped, tag = 'input window, operand 1, single buffered']
    #allocation6 [shape = 's32[1]{0}', space=sflag, size = 0x4, scoped, tag = 'scoped memory for tpu_custom_call.1']
    #allocation7 [shape = 'u8[1024]{0}', space=vmem, size = 0x400, scoped, tag = 'output window, operand 0, single buffered']
    #allocation8 [shape = 'u8[1024]{0}', space=vmem, size = 0x400, scoped, tag = 'output window, operand 1, single buffered']
    #allocation9 [shape = 's32[1]{0}', space=sflag, size = 0x4, scoped, tag = 'scoped memory for tpu_custom_call.1']
    %9 = vsyncpa [#allocation3], 0
    %10 = vsyncpa [#allocation6], 0
    %11 = vsyncpa [#allocation4], 0
    %12 = vsyncpa [#allocation9], 0
    // Predicated region
    $region2: #{tpu_custom_call.1} parent=1 // pred_check
      _
    $region3: #{tpu_custom_call.1} parent=1 // pred_check_branch
      %14 = sbr.rel (0) target = $region5
    $region4: #{tpu_custom_call.1} parent=1 // pred_region
      %s15 = sadd.s32 0, 0
      %s16 = smul.u32 16, %s15
      %s18 = ssub.s32 4096, 4096
      %19 = vsyncadd [#allocation3], %s18
      %s20 = smul.addr %s16, 128
      %s21 = scalar_lea.hbm %s0, %s20
      %s22 = sshll.u32 [#allocation2], 4
      %s23 = int_to_ptr.vmem [resolvable:$true] %s22
      %28 = dma.hbm_to_vmem [thread:$0]  %s21, 4096, %s23, [#allocation3], 128, 128, 8
    $region5: #{tpu_custom_call.1} parent=1 // pred_fallthru
      _
    // Predicated region
    $region6: #{tpu_custom_call.1} parent=1 // pred_check
      _
    $region7: #{tpu_custom_call.1} parent=1 // pred_check_branch
      %30 = sbr.rel (0) target = $region9
    $region8: #{tpu_custom_call.1} parent=1 // pred_region
      %s31 = sadd.s32 0, 0
      %s32 = smul.u32 16, %s31
      %s34 = ssub.s32 4096, 4096
      %35 = vsyncadd [#allocation6], %s34
      %s36 = smul.addr %s32, 128
      %s37 = scalar_lea.hbm %s1, %s36
      %s38 = sshll.u32 [#allocation5], 4
      %s39 = int_to_ptr.vmem [resolvable:$true] %s38
      %44 = dma.hbm_to_vmem [thread:$0]  %s37, 4096, %s39, [#allocation6], 128, 128, 8
    $region9: #{tpu_custom_call.1} parent=1 // pred_fallthru
      _
    // Predicated region
    $region10: #{tpu_custom_call.1} parent=1 // pred_check
      _
    $region11: #{tpu_custom_call.1} parent=1 // pred_check_branch
      %46 = sbr.rel (0) target = $region13
    $region12: #{tpu_custom_call.1} parent=1 // pred_region
      %47 = dma.done [#allocation3], 4096
    $region13: #{tpu_custom_call.1} parent=1 // pred_fallthru
      _
    // Predicated region
    $region14: #{tpu_custom_call.1} parent=1 // pred_check
      _
    $region15: #{tpu_custom_call.1} parent=1 // pred_check_branch
      %49 = sbr.rel (0) target = $region17
    $region16: #{tpu_custom_call.1} parent=1 // pred_region
      %50 = dma.done [#allocation6], 4096
    $region17: #{tpu_custom_call.1} parent=1 // pred_fallthru
      _
    %s51 = sadd.s32 0, 0
    %s52 = smul.u32 16, %s51
    %s53 = sadd.s32 0, 0
    %s54 = smul.u32 16, %s53
    %p55 = scmp.eq.s32.totalorder 0, 0
    // Predicated region
    $region18: #{tpu_custom_call.1} parent=1 // pred_check
      %p56 = pneg %p55
    $region19: #{tpu_custom_call.1} parent=1 // pred_check_branch
      %58 = sbr.rel (%p56) target = $region21
    $region20: #{tpu_custom_call.1} parent=1 // pred_region
      %59 = vst [vmem:[#allocation7] sm:$0x3] 0.0
      %60 = vst [vmem:[#allocation8] sm:$0x3] 0.0
    $region21: #{tpu_custom_call.1} parent=1 // pred_fallthru
      _
    %v61 = vld [vmem:[#allocation2] sm:$0xff]
    %v62 = vld [vmem:[#allocation2 + $0x8] sm:$0xff]
    %v63 = vld [vmem:[#allocation2 + $0x10] sm:$0xff]
    %v64 = vld [vmem:[#allocation2 + $0x18] sm:$0xff]
    %v65 = vld [vmem:[#allocation2 + $0x20] sm:$0xff]
    %v66 = vld [vmem:[#allocation2 + $0x28] sm:$0xff]
    %v67 = vld [vmem:[#allocation2 + $0x30] sm:$0xff]
    %v68 = vld [vmem:[#allocation2 + $0x38] sm:$0xff]
    %v69 = vld [vmem:[#allocation2 + $0x40] sm:$0xff]
    %v70 = vld [vmem:[#allocation2 + $0x48] sm:$0xff]
    %v71 = vld [vmem:[#allocation2 + $0x50] sm:$0xff]
    %v72 = vld [vmem:[#allocation2 + $0x58] sm:$0xff]
    %v73 = vld [vmem:[#allocation2 + $0x60] sm:$0xff]
    %v74 = vld [vmem:[#allocation2 + $0x68] sm:$0xff]
    %v75 = vld [vmem:[#allocation2 + $0x70] sm:$0xff]
    %v76 = vld [vmem:[#allocation2 + $0x78] sm:$0xff]
    %v77 = vld [vmem:[#allocation2 + $0x80] sm:$0xff]
    %v78 = vld [vmem:[#allocation2 + $0x88] sm:$0xff]
    %v79 = vld [vmem:[#allocation2 + $0x90] sm:$0xff]
    %v80 = vld [vmem:[#allocation2 + $0x98] sm:$0xff]
    %v81 = vld [vmem:[#allocation2 + $0xa0] sm:$0xff]
    %v82 = vld [vmem:[#allocation2 + $0xa8] sm:$0xff]
    %v83 = vld [vmem:[#allocation2 + $0xb0] sm:$0xff]
    %v84 = vld [vmem:[#allocation2 + $0xb8] sm:$0xff]
    %v85 = vld [vmem:[#allocation2 + $0xc0] sm:$0xff]
    %v86 = vld [vmem:[#allocation2 + $0xc8] sm:$0xff]
    %v87 = vld [vmem:[#allocation2 + $0xd0] sm:$0xff]
    %v88 = vld [vmem:[#allocation2 + $0xd8] sm:$0xff]
    %v89 = vld [vmem:[#allocation2 + $0xe0] sm:$0xff]
    %v90 = vld [vmem:[#allocation2 + $0xe8] sm:$0xff]
    %v91 = vld [vmem:[#allocation2 + $0xf0] sm:$0xff]
    %v92 = vld [vmem:[#allocation2 + $0xf8] sm:$0xff]
    %v93 = vld [vmem:[#allocation5] sm:$0xff]
    %v94 = vld [vmem:[#allocation5 + $0x8] sm:$0xff]
    %v95 = vld [vmem:[#allocation5 + $0x10] sm:$0xff]
    %v96 = vld [vmem:[#allocation5 + $0x18] sm:$0xff]
    %v97 = vld [vmem:[#allocation5 + $0x20] sm:$0xff]
    %v98 = vld [vmem:[#allocation5 + $0x28] sm:$0xff]
    %v99 = vld [vmem:[#allocation5 + $0x30] sm:$0xff]
    %v100 = vld [vmem:[#allocation5 + $0x38] sm:$0xff]
    %v101 = vld [vmem:[#allocation5 + $0x40] sm:$0xff]
    %v102 = vld [vmem:[#allocation5 + $0x48] sm:$0xff]
    %v103 = vld [vmem:[#allocation5 + $0x50] sm:$0xff]
    %v104 = vld [vmem:[#allocation5 + $0x58] sm:$0xff]
    %v105 = vld [vmem:[#allocation5 + $0x60] sm:$0xff]
    %v106 = vld [vmem:[#allocation5 + $0x68] sm:$0xff]
    %v107 = vld [vmem:[#allocation5 + $0x70] sm:$0xff]
    %v108 = vld [vmem:[#allocation5 + $0x78] sm:$0xff]
    %v109 = vld [vmem:[#allocation5 + $0x80] sm:$0xff]
    %v110 = vld [vmem:[#allocation5 + $0x88] sm:$0xff]
    %v111 = vld [vmem:[#allocation5 + $0x90] sm:$0xff]
    %v112 = vld [vmem:[#allocation5 + $0x98] sm:$0xff]
    %v113 = vld [vmem:[#allocation5 + $0xa0] sm:$0xff]
    %v114 = vld [vmem:[#allocation5 + $0xa8] sm:$0xff]
    %v115 = vld [vmem:[#allocation5 + $0xb0] sm:$0xff]
    %v116 = vld [vmem:[#allocation5 + $0xb8] sm:$0xff]
    %v117 = vld [vmem:[#allocation5 + $0xc0] sm:$0xff]
    %v118 = vld [vmem:[#allocation5 + $0xc8] sm:$0xff]
    %v119 = vld [vmem:[#allocation5 + $0xd0] sm:$0xff]
    %v120 = vld [vmem:[#allocation5 + $0xd8] sm:$0xff]
    %v121 = vld [vmem:[#allocation5 + $0xe0] sm:$0xff]
    %v122 = vld [vmem:[#allocation5 + $0xe8] sm:$0xff]
    %v123 = vld [vmem:[#allocation5 + $0xf0] sm:$0xff]
    %v124 = vld [vmem:[#allocation5 + $0xf8] sm:$0xff]
    %v125 = vld [vmem:[#allocation7] sm:$0x3]
    %v126 = vmul.f32 %v61, %v93
    %v127 = vmul.f32 %v62, %v94
    %v128 = vmul.f32 %v63, %v95
    %v129 = vmul.f32 %v64, %v96
    %v130 = vmul.f32 %v65, %v97
    %v131 = vmul.f32 %v66, %v98
    %v132 = vmul.f32 %v67, %v99
    %v133 = vmul.f32 %v68, %v100
    %v134 = vmul.f32 %v69, %v101
    %v135 = vmul.f32 %v70, %v102
    %v136 = vmul.f32 %v71, %v103
    %v137 = vmul.f32 %v72, %v104
    %v138 = vmul.f32 %v73, %v105
    %v139 = vmul.f32 %v74, %v106
    %v140 = vmul.f32 %v75, %v107
    %v141 = vmul.f32 %v76, %v108
    %v142 = vmul.f32 %v77, %v109
    %v143 = vmul.f32 %v78, %v110
    %v144 = vmul.f32 %v79, %v111
    %v145 = vmul.f32 %v80, %v112
    %v146 = vmul.f32 %v81, %v113
    %v147 = vmul.f32 %v82, %v114
    %v148 = vmul.f32 %v83, %v115
    %v149 = vmul.f32 %v84, %v116
    %v150 = vmul.f32 %v85, %v117
    %v151 = vmul.f32 %v86, %v118
    %v152 = vmul.f32 %v87, %v119
    %v153 = vmul.f32 %v88, %v120
    %v154 = vmul.f32 %v89, %v121
    %v155 = vmul.f32 %v90, %v122
    %v156 = vmul.f32 %v91, %v123
    %v157 = vmul.f32 %v92, %v124
    %v158 = vadd.f32 %v126, %v127
    %v159 = vadd.f32 %v158, %v128
    %v160 = vadd.f32 %v159, %v129
    %v161 = vadd.f32 %v160, %v130
    %v162 = vadd.f32 %v161, %v131
    %v163 = vadd.f32 %v162, %v132
    %v164 = vadd.f32 %v163, %v133
    %v165 = vadd.f32 %v164, %v134
    %v166 = vadd.f32 %v165, %v135
    %v167 = vadd.f32 %v166, %v136
    %v168 = vadd.f32 %v167, %v137
    %v169 = vadd.f32 %v168, %v138
    %v170 = vadd.f32 %v169, %v139
    %v171 = vadd.f32 %v170, %v140
    %v172 = vadd.f32 %v171, %v141
    %v173 = vrot.slane %v172, 4
    %v174 = vadd.f32 %v172, %v173
    %v175 = vrot.slane %v174, 2
    %v176 = vadd.f32 %v174, %v175
    %v177 = vrot.slane %v176, 1
    %v178 = vadd.f32 %v176, %v177
    %v179 = vadd.f32 %v142, %v143
    %v180 = vadd.f32 %v179, %v144
    %v181 = vadd.f32 %v180, %v145
    %v182 = vadd.f32 %v181, %v146
    %v183 = vadd.f32 %v182, %v147
    %v184 = vadd.f32 %v183, %v148
    %v185 = vadd.f32 %v184, %v149
    %v186 = vadd.f32 %v185, %v150
    %v187 = vadd.f32 %v186, %v151
    %v188 = vadd.f32 %v187, %v152
    %v189 = vadd.f32 %v188, %v153
    %v190 = vadd.f32 %v189, %v154
    %v191 = vadd.f32 %v190, %v155
    %v192 = vadd.f32 %v191, %v156
    %v193 = vadd.f32 %v192, %v157
    %v194 = vrot.slane %v193, 4
    %v195 = vadd.f32 %v193, %v194
    %v196 = vrot.slane %v195, 2
    %v197 = vadd.f32 %v195, %v196
    %v198 = vrot.slane %v197, 1
    %v199 = vadd.f32 %v197, %v198
    %vm202 = vcmask 1041409
    %v203 = vsel %vm202, %v199, %v178
    %v205 = vadd.f32 %v125, %v203
    %206 = vst [vmem:[#allocation7] sm:$0x3] %v205
    %v207 = vld [vmem:[#allocation8] sm:$0x3]
    %v208 = vadd.f32 %v61, %v93
    %v209 = vadd.f32 %v62, %v94
    %v210 = vadd.f32 %v63, %v95
    %v211 = vadd.f32 %v64, %v96
    %v212 = vadd.f32 %v65, %v97
    %v213 = vadd.f32 %v66, %v98
    %v214 = vadd.f32 %v67, %v99
    %v215 = vadd.f32 %v68, %v100
    %v216 = vadd.f32 %v69, %v101
    %v217 = vadd.f32 %v70, %v102
    %v218 = vadd.f32 %v71, %v103
    %v219 = vadd.f32 %v72, %v104
    %v220 = vadd.f32 %v73, %v105
    %v221 = vadd.f32 %v74, %v106
    %v222 = vadd.f32 %v75, %v107
    %v223 = vadd.f32 %v76, %v108
    %v224 = vadd.f32 %v77, %v109
    %v225 = vadd.f32 %v78, %v110
    %v226 = vadd.f32 %v79, %v111
    %v227 = vadd.f32 %v80, %v112
    %v228 = vadd.f32 %v81, %v113
    %v229 = vadd.f32 %v82, %v114
    %v230 = vadd.f32 %v83, %v115
    %v231 = vadd.f32 %v84, %v116
    %v232 = vadd.f32 %v85, %v117
    %v233 = vadd.f32 %v86, %v118
    %v234 = vadd.f32 %v87, %v119
    %v235 = vadd.f32 %v88, %v120
    %v236 = vadd.f32 %v89, %v121
    %v237 = vadd.f32 %v90, %v122
    %v238 = vadd.f32 %v91, %v123
    %v239 = vadd.f32 %v92, %v124
    %v240 = vadd.f32 %v208, %v209
    %v241 = vadd.f32 %v240, %v210
    %v242 = vadd.f32 %v241, %v211
    %v243 = vadd.f32 %v242, %v212
    %v244 = vadd.f32 %v243, %v213
    %v245 = vadd.f32 %v244, %v214
    %v246 = vadd.f32 %v245, %v215
    %v247 = vadd.f32 %v246, %v216
    %v248 = vadd.f32 %v247, %v217
    %v249 = vadd.f32 %v248, %v218
    %v250 = vadd.f32 %v249, %v219
    %v251 = vadd.f32 %v250, %v220
    %v252 = vadd.f32 %v251, %v221
    %v253 = vadd.f32 %v252, %v222
    %v254 = vadd.f32 %v253, %v223
    %v255 = vrot.slane %v254, 4
    %v256 = vadd.f32 %v254, %v255
    %v257 = vrot.slane %v256, 2
    %v258 = vadd.f32 %v256, %v257
    %v259 = vrot.slane %v258, 1
    %v260 = vadd.f32 %v258, %v259
    %v261 = vadd.f32 %v224, %v225
    %v262 = vadd.f32 %v261, %v226
    %v263 = vadd.f32 %v262, %v227
    %v264 = vadd.f32 %v263, %v228
    %v265 = vadd.f32 %v264, %v229
    %v266 = vadd.f32 %v265, %v230
    %v267 = vadd.f32 %v266, %v231
    %v268 = vadd.f32 %v267, %v232
    %v269 = vadd.f32 %v268, %v233
    %v270 = vadd.f32 %v269, %v234
    %v271 = vadd.f32 %v270, %v235
    %v272 = vadd.f32 %v271, %v236
    %v273 = vadd.f32 %v272, %v237
    %v274 = vadd.f32 %v273, %v238
    %v275 = vadd.f32 %v274, %v239
    %v276 = vrot.slane %v275, 4
    %v277 = vadd.f32 %v275, %v276
    %v278 = vrot.slane %v277, 2
    %v279 = vadd.f32 %v277, %v278
    %v280 = vrot.slane %v279, 1
    %v281 = vadd.f32 %v279, %v280
    %v284 = vsel %vm202, %v281, %v260
    %v286 = vadd.f32 %v207, %v284
    %287 = vst [vmem:[#allocation8] sm:$0x3] %v286
    // Predicated region
    $region22: #{tpu_custom_call.1} parent=1 // pred_check
      _
    $region23: #{tpu_custom_call.1} parent=1 // pred_check_branch
      %289 = sbr.rel (0) target = $region25
    $region24: #{tpu_custom_call.1} parent=1 // pred_region
      %s291 = ssub.s32 32, 32
      %292 = vsyncadd [#allocation4], %s291
      %s294 = sshll.u32 [#allocation7], 4
      %s295 = int_to_ptr.vmem [resolvable:$true] %s294
      %297 = dma.vmem_to_hbm [thread:$0]  %s295, 32, %s2, [#allocation4]
    $region25: #{tpu_custom_call.1} parent=1 // pred_fallthru
      _
    // Predicated region
    $region26: #{tpu_custom_call.1} parent=1 // pred_check
      _
    $region27: #{tpu_custom_call.1} parent=1 // pred_check_branch
      %299 = sbr.rel (0) target = $region29
    $region28: #{tpu_custom_call.1} parent=1 // pred_region
      %s301 = ssub.s32 32, 32
      %302 = vsyncadd [#allocation9], %s301
      %s304 = sshll.u32 [#allocation8], 4
      %s305 = int_to_ptr.vmem [resolvable:$true] %s304
      %307 = dma.vmem_to_hbm [thread:$0]  %s305, 32, %s3, [#allocation9]
    $region29: #{tpu_custom_call.1} parent=1 // pred_fallthru
      _
    // Predicated region
    $region30: #{tpu_custom_call.1} parent=1 // pred_check
      _
    $region31: #{tpu_custom_call.1} parent=1 // pred_check_branch
      %309 = sbr.rel (0) target = $region33
    $region32: #{tpu_custom_call.1} parent=1 // pred_region
      %310 = dma.done [#allocation4], 32
    $region33: #{tpu_custom_call.1} parent=1 // pred_fallthru
      _
    // Predicated region
    $region34: #{tpu_custom_call.1} parent=1 // pred_check
      _
    $region35: #{tpu_custom_call.1} parent=1 // pred_check_branch
      %312 = sbr.rel (0) target = $region37
    $region36: #{tpu_custom_call.1} parent=1 // pred_region
      %313 = dma.done [#allocation9], 32
    $region37: #{tpu_custom_call.1} parent=1 // pred_fallthru
      _
    %314 = vsyncpa [#allocation3], 1
    %315 = vsyncpa [#allocation6], 1
    %316 = vsyncpa [#allocation4], 1
    %317 = vsyncpa [#allocation9], 1

</llo_original>
